<compile_context>
chip_gen: v6e
topology: v6e:2x2x1
jax: 0.10.0
libtpu: 0.0.40
codegen_flags: <defaults>
</compile_context>

<pallas_src>
import functools

import jax
import jax.numpy as jnp
from jax.experimental import pallas as pl
from jax.experimental.pallas import tpu as pltpu


LANE = 128


def _round_up(n, m):
    return ((n + m - 1) // m) * m


def _ln_padded(h, gamma, beta, true_width, eps=1e-5):
    """LayerNorm over the true (unpadded) feature width.

    Relies on the invariant that padded lanes of `h` are exactly zero, so
    sum(h) over the padded row equals the sum over the true width.
    """
    hp = h.shape[-1]
    inv_n = 1.0 / float(true_width)
    mean = jnp.sum(h, axis=-1, keepdims=True) * inv_n
    lane = jax.lax.broadcasted_iota(jnp.int32, (1, hp), 1)
    mask = lane < true_width
    centered = jnp.where(mask, h - mean, 0.0)
    var = jnp.sum(centered * centered, axis=-1, keepdims=True) * inv_n
    # gamma/beta are zero in padded lanes -> padded lanes stay exactly 0.
    return centered * jax.lax.rsqrt(var + eps) * gamma + beta


def actor_kernel(x_ref, w1_ref, w2_ref, wmu_ref, vecs_ref, bmu_ref, out_ref,
                 *, hidden):
    x = x_ref[...]                 # (block_b, Dp) f32
    vecs = vecs_ref[...]           # (8, Hp): [b1, g1, be1, b2, g2, be2, 0, 0]

    # linear1 -> LayerNorm -> ReLU
    h = jnp.dot(x, w1_ref[...], preferred_element_type=jnp.float32) + vecs[0:1]
    h = jnp.maximum(_ln_padded(h, vecs[1:2], vecs[2:3], hidden), 0.0)

    # linear2 -> LayerNorm -> ReLU
    h = jnp.dot(h, w2_ref[...], preferred_element_type=jnp.float32) + vecs[3:4]
    h = jnp.maximum(_ln_padded(h, vecs[4:5], vecs[5:6], hidden), 0.0)

    # mu -> tanh  (padded output lanes: tanh(0) = 0, sliced off in the wrapper)
    mu = jnp.dot(h, wmu_ref[...], preferred_element_type=jnp.float32) + bmu_ref[...]
    out_ref[...] = jnp.tanh(mu).astype(out_ref.dtype)


@functools.partial(jax.jit, static_argnames=("block_b",))
def actor_forward(x, params, block_b=256):
    B, num_inputs = x.shape
    hidden = params["w1"].shape[1]
    num_outputs = params["wmu"].shape[1]

    dp = _round_up(num_inputs, LANE)
    hp = _round_up(hidden, LANE)
    op = _round_up(num_outputs, LANE)
    bp = _round_up(B, 8)

    # Static batch tile: multiple of 8, no larger than the (padded) batch.
    bb = max(8, (min(block_b, bp) // 8) * 8)
    grid = (pl.cdiv(bp, bb),)

    # Zero-pad inputs / parameters to lane-dense widths.
    xp = jnp.pad(x, ((0, bp - B), (0, dp - num_inputs)))
    w1 = jnp.pad(params["w1"], ((0, dp - num_inputs), (0, hp - hidden)))
    w2 = jnp.pad(params["w2"], ((0, hp - hidden), (0, hp - hidden)))
    wmu = jnp.pad(params["wmu"], ((0, hp - hidden), (0, op - num_outputs)))
    bmu = jnp.pad(params["bmu"], ((0, 0), (0, op - num_outputs)))

    pad_h = lambda v: jnp.pad(v, ((0, 0), (0, hp - hidden)))
    vecs = jnp.concatenate(
        [pad_h(params[k]) for k in ("b1", "g1", "be1", "b2", "g2", "be2")]
        + [jnp.zeros((2, hp), jnp.float32)],
        axis=0)  # (8, Hp)

    def full(a):
        return pl.BlockSpec(a.shape, lambda i: (0,) * a.ndim)

    flops = 2 * bp * (dp * hp + hp * hp + hp * op)
    transcendentals = bp * (op + 2)                       # tanh row + 2 rsqrt/row
    bytes_accessed = 4 * (bp * dp + bp * op
                          + dp * hp + hp * hp + hp * op + 8 * hp + op)

    out = pl.pallas_call(
        functools.partial(actor_kernel, hidden=hidden),
        out_shape=jax.ShapeDtypeStruct((bp, op), jnp.float32),
        grid_spec=pltpu.PrefetchScalarGridSpec(
            num_scalar_prefetch=0,
            grid=grid,
            in_specs=[
                pl.BlockSpec((bb, dp), lambda i: (i, 0)),   # x: tiled over batch
                full(w1), full(w2), full(wmu),              # grid-invariant weights
                full(vecs), full(bmu),                      # bundled vectors
            ],
            out_specs=pl.BlockSpec((bb, op), lambda i: (i, 0)),
        ),
        compiler_params=pltpu.CompilerParams(
            dimension_semantics=("parallel",)),
        cost_estimate=pl.CostEstimate(
            flops=flops,
            transcendentals=transcendentals,
            bytes_accessed=bytes_accessed),
    )(xp, w1, w2, wmu, vecs, bmu)

    return out[:B, :num_outputs]


def init_actor_params(key, num_inputs, hidden_size, action_space):
    """Deterministic init mimicking PyTorch nn.Linear defaults (U(-1/sqrt(fan_in), ...))."""
    ks = jax.random.split(key, 6)

    def linear(kw, kb, fan_in, fan_out):
        bound = 1.0 / jnp.sqrt(fan_in)
        w = jax.random.uniform(kw, (fan_in, fan_out), jnp.float32, -bound, bound)
        b = jax.random.uniform(kb, (1, fan_out), jnp.float32, -bound, bound)
        return w, b

    w1, b1 = linear(ks[0], ks[1], num_inputs, hidden_size)
    w2, b2 = linear(ks[2], ks[3], hidden_size, hidden_size)
    wmu, bmu = linear(ks[4], ks[5], hidden_size, action_space)
    return {
        "w1": w1, "b1": b1,
        "g1": jnp.ones((1, hidden_size), jnp.float32),
        "be1": jnp.zeros((1, hidden_size), jnp.float32),
        "w2": w2, "b2": b2,
        "g2": jnp.ones((1, hidden_size), jnp.float32),
        "be2": jnp.zeros((1, hidden_size), jnp.float32),
        "wmu": wmu, "bmu": bmu,
    }


def _layernorm_ref(h, gamma, beta, eps=1e-5):
    mean = jnp.mean(h, axis=-1, keepdims=True)
    var = jnp.mean((h - mean) ** 2, axis=-1, keepdims=True)
    return (h - mean) * jax.lax.rsqrt(var + eps) * gamma + beta


def actor_ref(x, p):
    """Pure-JAX reference for correctness checking (unpadded)."""
    h = x @ p["w1"] + p["b1"]
    h = jnp.maximum(_layernorm_ref(h, p["g1"], p["be1"]), 0.0)
    h = h @ p["w2"] + p["b2"]
    h = jnp.maximum(_layernorm_ref(h, p["g2"], p["be2"]), 0.0)
    return jnp.tanh(h @ p["wmu"] + p["bmu"])


if __name__ == "__main__":
    key = jax.random.PRNGKey(0)
    k_x, k_p = jax.random.split(key)

    # Small demo shapes consistent with the module; batch=16 with block_b=8 gives
    # a 2-step batch grid so v7x's two TensorCores both get work.
    batch = 16
    num_inputs = 16
    hidden_size = 32
    action_space = 4

    x = jax.random.normal(k_x, (batch, num_inputs), jnp.float32)
    params = init_actor_params(k_p, num_inputs, hidden_size, action_space)

    out = actor_forward(x, params, block_b=8)
    out = jax.block_until_ready(out)

    ref = actor_ref(x, params)
    assert out.shape == (batch, action_space)
    assert jnp.allclose(out, ref, atol=1e-5, rtol=1e-5), "mismatch vs reference"

    print("KERNEL_OK")
</pallas_src>

<mosaic_0001>
module attributes {stable_mosaic.version = 11 : i64} {
  func.func @actor_kernel(%arg0: i32, %arg1: memref<8x128xf32, #tpu.memory_space<vmem>>, %arg2: memref<128x128xf32, #tpu.memory_space<vmem>>, %arg3: memref<128x128xf32, #tpu.memory_space<vmem>>, %arg4: memref<128x128xf32, #tpu.memory_space<vmem>>, %arg5: memref<8x128xf32, #tpu.memory_space<vmem>>, %arg6: memref<1x128xf32, #tpu.memory_space<vmem>>, %arg7: memref<8x128xf32, #tpu.memory_space<vmem>>) attributes {dimension_semantics = [#tpu.dimension_semantics<parallel>], iteration_bounds = array<i64: 2>, scalar_prefetch = 0 : i64, scratch_operands = 0 : i64, tpu.core_type = #tpu.core_type<tc>, window_params = [{transform_indices = @transform_0, window_bounds = array<i64: 8, 128>}, {pipeline_mode = #tpu.pipeline_mode<synchronous>, transform_indices = @transform_1, window_bounds = array<i64: 128, 128>}, {pipeline_mode = #tpu.pipeline_mode<synchronous>, transform_indices = @transform_2, window_bounds = array<i64: 128, 128>}, {pipeline_mode = #tpu.pipeline_mode<synchronous>, transform_indices = @transform_3, window_bounds = array<i64: 128, 128>}, {pipeline_mode = #tpu.pipeline_mode<synchronous>, transform_indices = @transform_4, window_bounds = array<i64: 8, 128>}, {pipeline_mode = #tpu.pipeline_mode<synchronous>, transform_indices = @transform_5, window_bounds = array<i64: 1, 128>}, {transform_indices = @transform_6, window_bounds = array<i64: 8, 128>}]} {
    %c0 = arith.constant 0 : index
    %c0_0 = arith.constant 0 : index
    %0 = vector.load %arg1[%c0, %c0_0] : memref<8x128xf32, #tpu.memory_space<vmem>>, vector<8x128xf32>
    %c0_1 = arith.constant 0 : index
    %c0_2 = arith.constant 0 : index
    %1 = vector.load %arg5[%c0_1, %c0_2] : memref<8x128xf32, #tpu.memory_space<vmem>>, vector<8x128xf32>
    %c0_3 = arith.constant 0 : index
    %c0_4 = arith.constant 0 : index
    %2 = vector.load %arg2[%c0_3, %c0_4] : memref<128x128xf32, #tpu.memory_space<vmem>>, vector<128x128xf32>
    %cst = arith.constant dense<0.000000e+00> : vector<8x128xf32>
    %3 = tpu.matmul %0, %2, %cst {dimension_numbers = #tpu.dot_dimension_numbers<[1], [0], [0], [1], [0, 0, 1, 1], [], []>} : vector<8x128xf32>, vector<128x128xf32>, vector<8x128xf32> -> vector<8x128xf32>
    %4 = vector.extract_strided_slice %1 {offsets = [0, 0], sizes = [1, 128], strides = [1, 1]} : vector<8x128xf32> to vector<1x128xf32>
    %5 = vector.broadcast %4 : vector<1x128xf32> to vector<8x128xf32>
    %6 = arith.addf %3, %5 : vector<8x128xf32>
    %7 = vector.extract_strided_slice %1 {offsets = [1, 0], sizes = [1, 128], strides = [1, 1]} : vector<8x128xf32> to vector<1x128xf32>
    %8 = vector.extract_strided_slice %1 {offsets = [2, 0], sizes = [1, 128], strides = [1, 1]} : vector<8x128xf32> to vector<1x128xf32>
    %cst_5 = arith.constant dense<0.000000e+00> : vector<8xf32>
    %9 = vector.multi_reduction <add>, %6, %cst_5 [1] : vector<8x128xf32> to vector<8xf32>
    %10 = vector.shape_cast %9 : vector<8xf32> to vector<8x1xf32>
    %cst_6 = arith.constant 3.125000e-02 : f32
    %11 = vector.broadcast %cst_6 : f32 to vector<8x1xf32>
    %12 = arith.mulf %10, %11 : vector<8x1xf32>
    %13 = tpu.iota {dimensions = array<i32: 1>} : vector<1x128xi32>
    %c32_i32 = arith.constant 32 : i32
    %14 = vector.broadcast %c32_i32 : i32 to vector<1x128xi32>
    %15 = arith.cmpi slt, %13, %14 : vector<1x128xi32>
    %16 = vector.broadcast %12 : vector<8x1xf32> to vector<8x128xf32>
    %17 = arith.subf %6, %16 : vector<8x128xf32>
    %cst_7 = arith.constant 0.000000e+00 : f32
    %18 = vector.shape_cast %15 : vector<1x128xi1> to vector<1x128xi1>
    %19 = vector.broadcast %18 : vector<1x128xi1> to vector<8x128xi1>
    %20 = vector.broadcast %cst_7 : f32 to vector<8x128xf32>
    %21 = arith.select %19, %17, %20 : vector<8x128xi1>, vector<8x128xf32>
    %22 = arith.mulf %21, %21 : vector<8x128xf32>
    %cst_8 = arith.constant dense<0.000000e+00> : vector<8xf32>
    %23 = vector.multi_reduction <add>, %22, %cst_8 [1] : vector<8x128xf32> to vector<8xf32>
    %24 = vector.shape_cast %23 : vector<8xf32> to vector<8x1xf32>
    %cst_9 = arith.constant 3.125000e-02 : f32
    %25 = vector.broadcast %cst_9 : f32 to vector<8x1xf32>
    %26 = arith.mulf %24, %25 : vector<8x1xf32>
    %cst_10 = arith.constant 9.99999974E-6 : f32
    %27 = vector.broadcast %cst_10 : f32 to vector<8x1xf32>
    %28 = arith.addf %26, %27 : vector<8x1xf32>
    %29 = math.rsqrt %28 : vector<8x1xf32>
    %30 = vector.broadcast %29 : vector<8x1xf32> to vector<8x128xf32>
    %31 = arith.mulf %21, %30 : vector<8x128xf32>
    %32 = vector.broadcast %7 : vector<1x128xf32> to vector<8x128xf32>
    %33 = arith.mulf %31, %32 : vector<8x128xf32>
    %34 = vector.broadcast %8 : vector<1x128xf32> to vector<8x128xf32>
    %35 = arith.addf %33, %34 : vector<8x128xf32>
    %cst_11 = arith.constant 0.000000e+00 : f32
    %36 = vector.broadcast %cst_11 : f32 to vector<8x128xf32>
    %37 = arith.maximumf %35, %36 : vector<8x128xf32>
    %c0_12 = arith.constant 0 : index
    %c0_13 = arith.constant 0 : index
    %38 = vector.load %arg3[%c0_12, %c0_13] : memref<128x128xf32, #tpu.memory_space<vmem>>, vector<128x128xf32>
    %cst_14 = arith.constant dense<0.000000e+00> : vector<8x128xf32>
    %39 = tpu.matmul %37, %38, %cst_14 {dimension_numbers = #tpu.dot_dimension_numbers<[1], [0], [0], [1], [0, 0, 1, 1], [], []>} : vector<8x128xf32>, vector<128x128xf32>, vector<8x128xf32> -> vector<8x128xf32>
    %40 = vector.extract_strided_slice %1 {offsets = [3, 0], sizes = [1, 128], strides = [1, 1]} : vector<8x128xf32> to vector<1x128xf32>
    %41 = vector.broadcast %40 : vector<1x128xf32> to vector<8x128xf32>
    %42 = arith.addf %39, %41 : vector<8x128xf32>
    %43 = vector.extract_strided_slice %1 {offsets = [4, 0], sizes = [1, 128], strides = [1, 1]} : vector<8x128xf32> to vector<1x128xf32>
    %44 = vector.extract_strided_slice %1 {offsets = [5, 0], sizes = [1, 128], strides = [1, 1]} : vector<8x128xf32> to vector<1x128xf32>
    %cst_15 = arith.constant dense<0.000000e+00> : vector<8xf32>
    %45 = vector.multi_reduction <add>, %42, %cst_15 [1] : vector<8x128xf32> to vector<8xf32>
    %46 = vector.shape_cast %45 : vector<8xf32> to vector<8x1xf32>
    %cst_16 = arith.constant 3.125000e-02 : f32
    %47 = vector.broadcast %cst_16 : f32 to vector<8x1xf32>
    %48 = arith.mulf %46, %47 : vector<8x1xf32>
    %49 = tpu.iota {dimensions = array<i32: 1>} : vector<1x128xi32>
    %c32_i32_17 = arith.constant 32 : i32
    %50 = vector.broadcast %c32_i32_17 : i32 to vector<1x128xi32>
    %51 = arith.cmpi slt, %49, %50 : vector<1x128xi32>
    %52 = vector.broadcast %48 : vector<8x1xf32> to vector<8x128xf32>
    %53 = arith.subf %42, %52 : vector<8x128xf32>
    %cst_18 = arith.constant 0.000000e+00 : f32
    %54 = vector.shape_cast %51 : vector<1x128xi1> to vector<1x128xi1>
    %55 = vector.broadcast %54 : vector<1x128xi1> to vector<8x128xi1>
    %56 = vector.broadcast %cst_18 : f32 to vector<8x128xf32>
    %57 = arith.select %55, %53, %56 : vector<8x128xi1>, vector<8x128xf32>
    %58 = arith.mulf %57, %57 : vector<8x128xf32>
    %cst_19 = arith.constant dense<0.000000e+00> : vector<8xf32>
    %59 = vector.multi_reduction <add>, %58, %cst_19 [1] : vector<8x128xf32> to vector<8xf32>
    %60 = vector.shape_cast %59 : vector<8xf32> to vector<8x1xf32>
    %cst_20 = arith.constant 3.125000e-02 : f32
    %61 = vector.broadcast %cst_20 : f32 to vector<8x1xf32>
    %62 = arith.mulf %60, %61 : vector<8x1xf32>
    %cst_21 = arith.constant 9.99999974E-6 : f32
    %63 = vector.broadcast %cst_21 : f32 to vector<8x1xf32>
    %64 = arith.addf %62, %63 : vector<8x1xf32>
    %65 = math.rsqrt %64 : vector<8x1xf32>
    %66 = vector.broadcast %65 : vector<8x1xf32> to vector<8x128xf32>
    %67 = arith.mulf %57, %66 : vector<8x128xf32>
    %68 = vector.broadcast %43 : vector<1x128xf32> to vector<8x128xf32>
    %69 = arith.mulf %67, %68 : vector<8x128xf32>
    %70 = vector.broadcast %44 : vector<1x128xf32> to vector<8x128xf32>
    %71 = arith.addf %69, %70 : vector<8x128xf32>
    %cst_22 = arith.constant 0.000000e+00 : f32
    %72 = vector.broadcast %cst_22 : f32 to vector<8x128xf32>
    %73 = arith.maximumf %71, %72 : vector<8x128xf32>
    %c0_23 = arith.constant 0 : index
    %c0_24 = arith.constant 0 : index
    %74 = vector.load %arg4[%c0_23, %c0_24] : memref<128x128xf32, #tpu.memory_space<vmem>>, vector<128x128xf32>
    %cst_25 = arith.constant dense<0.000000e+00> : vector<8x128xf32>
    %75 = tpu.matmul %73, %74, %cst_25 {dimension_numbers = #tpu.dot_dimension_numbers<[1], [0], [0], [1], [0, 0, 1, 1], [], []>} : vector<8x128xf32>, vector<128x128xf32>, vector<8x128xf32> -> vector<8x128xf32>
    %c0_26 = arith.constant 0 : index
    %c0_27 = arith.constant 0 : index
    %76 = vector.load %arg6[%c0_26, %c0_27] : memref<1x128xf32, #tpu.memory_space<vmem>>, vector<1x128xf32>
    %77 = vector.broadcast %76 : vector<1x128xf32> to vector<8x128xf32>
    %78 = arith.addf %75, %77 : vector<8x128xf32>
    %79 = math.tanh %78 : vector<8x128xf32>
    %c0_28 = arith.constant 0 : index
    %c0_29 = arith.constant 0 : index
    %80 = vector.load %arg7[%c0_28, %c0_29] : memref<8x128xf32, #tpu.memory_space<vmem>>, vector<8x128xf32>
    tpu.vector_store %arg7[%c0_28, %c0_29], %79 {strides = array<i32>} : memref<8x128xf32, #tpu.memory_space<vmem>>, vector<8x128xf32>,
    return
  }
  func.func @transform_0(%arg0: i32) -> (i32, i32) {
    %c0_i32 = arith.constant 0 : i32
    %c0_i32_0 = arith.constant 0 : i32
    return %arg0, %c0_i32 : i32, i32
  }
  func.func @transform_1(%arg0: i32) -> (i32, i32) {
    %c0_i32 = arith.constant 0 : i32
    %c0_i32_0 = arith.constant 0 : i32
    %c0_i32_1 = arith.constant 0 : i32
    return %c0_i32, %c0_i32_0 : i32, i32
  }
  func.func @transform_2(%arg0: i32) -> (i32, i32) {
    %c0_i32 = arith.constant 0 : i32
    %c0_i32_0 = arith.constant 0 : i32
    %c0_i32_1 = arith.constant 0 : i32
    return %c0_i32, %c0_i32_0 : i32, i32
  }
  func.func @transform_3(%arg0: i32) -> (i32, i32) {
    %c0_i32 = arith.constant 0 : i32
    %c0_i32_0 = arith.constant 0 : i32
    %c0_i32_1 = arith.constant 0 : i32
    return %c0_i32, %c0_i32_0 : i32, i32
  }
  func.func @transform_4(%arg0: i32) -> (i32, i32) {
    %c0_i32 = arith.constant 0 : i32
    %c0_i32_0 = arith.constant 0 : i32
    %c0_i32_1 = arith.constant 0 : i32
    return %c0_i32, %c0_i32_0 : i32, i32
  }
  func.func @transform_5(%arg0: i32) -> (i32, i32) {
    %c0_i32 = arith.constant 0 : i32
    %c0_i32_0 = arith.constant 0 : i32
    %c0_i32_1 = arith.constant 0 : i32
    return %c0_i32, %c0_i32_0 : i32, i32
  }
  func.func @transform_6(%arg0: i32) -> (i32, i32) {
    %c0_i32 = arith.constant 0 : i32
    %c0_i32_0 = arith.constant 0 : i32
    return %arg0, %c0_i32 : i32, i32
  }
}

</mosaic_0001>

<llo_original>
// kernel: actor_forward.1
$region0: #{actor_forward.1}
  #allocation0 [shape = 'u32[]', space=smem, size = 0x4, offset = 0x4, fixed_abs, tag = 'smem constant byte address 0x4 - core index']
  #allocation1 [shape = 'u32[144,128]{1,0:T(1,128)}', space=vmem, size = 0x12000, scoped, tag = 'internal scratch']
  %s0 = inlined_call_operand.vmem [shape: f32[16,128], index: 0, kind: input, shape index: {}]
  %s1 = inlined_call_operand.vmem [shape: f32[128,128], index: 1, kind: input, shape index: {}]
  %s2 = inlined_call_operand.vmem [shape: f32[128,128], index: 2, kind: input, shape index: {}]
  %s3 = inlined_call_operand.vmem [shape: f32[128,128], index: 3, kind: input, shape index: {}]
  %s4 = inlined_call_operand.vmem [shape: f32[8,128], index: 4, kind: input, shape index: {}]
  %s5 = inlined_call_operand.vmem [shape: f32[1,128], index: 5, kind: input, shape index: {}]
  %s6 = inlined_call_operand.vmem [shape: f32[16,128], index: 6, kind: output, shape index: {}]
  %s7 = sld [smem:[#allocation0]]
  $region57: #{actor_forward.1} parent=0
    _
  %s9 = ssub.s32 1, %s7
  %s10 = scalar_select 0, %s9, %s7
  loop: start=0, step=1, limit=4
  $region2: #{actor_forward.1} parent=0 // loop_pre_header
    _
  $region3: #{actor_forward.1} parent=0 // loop_header
    %s12 = sphi 0, %s16
    %p13 = scmp.ge.s32.totalorder %s12, 4
    %s22 = sphi 0, %s24
    %s25 = sphi 0, %s22
    %s26 = sphi 0, %s25
    %s42 = sphi 0, %s26
    %s46 = sphi 0, %s46
    %s48 = sphi 0, %s46
    %s49 = sphi 0, %s48
    %s63 = sphi 0, %s49
    %s67 = sphi 0, %s67
    %s69 = sphi 0, %s67
    %s70 = sphi 0, %s69
    %s84 = sphi 0, %s70
    %s88 = sphi 0, %s88
    %s90 = sphi 0, %s88
    %s91 = sphi 0, %s90
    %s105 = sphi 0, %s91
    %s109 = sphi 0, %s109
    %s111 = sphi 0, %s109
    %s112 = sphi 0, %s111
    %s126 = sphi 0, %s112
    %s130 = sphi 0, %s130
    %s132 = sphi 0, %s130
    %s133 = sphi 0, %s132
    %s147 = sphi 0, %s133
    %s153 = sphi 0, %s155
    %s156 = sphi 0, %s153
    %s157 = sphi 0, %s156
    %s173 = sphi 0, %s157
  $region4: #{actor_forward.1} parent=0 // loop_header_branch
    %15 = sbr.rel (%p13) target = $region8
  $region5: #{actor_forward.1} parent=0 // loop_body
    %s17 = ssub.s32 %s12, 1
    %s18 = ssub.s32 %s12, 2
    %s19 = sadd.s32 %s12, 1
    %s20 = ssub.s32 %s12, %s19
    %p21 = scmp.eq.s32.totalorder %s20, 0
    %s23 = sadd.s32 %s22, 1
    %s24 = scalar_select %p21, %s22, %s23
    %p27 = pneg %p21
    %p28 = scmp.eq.s32.totalorder %s12, 1
    %p29 = por %p27, %p28
    %p30 = scmp.ne.s32.totalorder %s22, %s25
    %p31 = scmp.eq.s32.totalorder %s12, 0
    %p32 = por %p30, %p31
    %p33 = scmp.ne.s32.totalorder %s22, %s25
    %p34 = scmp.eq.s32.totalorder %s17, 1
    %p35 = por %p33, %p34
    %p36 = scmp.ne.s32.totalorder %s25, %s26
    %p37 = scmp.eq.s32.totalorder %s17, 0
    %p38 = por %p36, %p37
    %p39 = scmp.ne.s32.totalorder %s25, %s26
    %p40 = scmp.eq.s32.totalorder %s18, 1
    %p41 = por %p39, %p40
    %p43 = scmp.ne.s32.totalorder %s26, %s42
    %p44 = scmp.eq.s32.totalorder %s18, 0
    %p45 = por %p43, %p44
    %s47 = sadd.s32 %s46, 1
    %p50 = scmp.eq.s32.totalorder %s12, 1
    %p51 = scmp.ne.s32.totalorder %s46, %s48
    %p52 = scmp.eq.s32.totalorder %s12, 0
    %p53 = por %p51, %p52
    %p54 = scmp.ne.s32.totalorder %s46, %s48
    %p55 = scmp.eq.s32.totalorder %s17, 1
    %p56 = por %p54, %p55
    %p57 = scmp.ne.s32.totalorder %s48, %s49
    %p58 = scmp.eq.s32.totalorder %s17, 0
    %p59 = por %p57, %p58
    %p60 = scmp.ne.s32.totalorder %s48, %s49
    %p61 = scmp.eq.s32.totalorder %s18, 1
    %p62 = por %p60, %p61
    %p64 = scmp.ne.s32.totalorder %s49, %s63
    %p65 = scmp.eq.s32.totalorder %s18, 0
    %p66 = por %p64, %p65
    %s68 = sadd.s32 %s67, 1
    %p71 = scmp.eq.s32.totalorder %s12, 1
    %p72 = scmp.ne.s32.totalorder %s67, %s69
    %p73 = scmp.eq.s32.totalorder %s12, 0
    %p74 = por %p72, %p73
    %p75 = scmp.ne.s32.totalorder %s67, %s69
    %p76 = scmp.eq.s32.totalorder %s17, 1
    %p77 = por %p75, %p76
    %p78 = scmp.ne.s32.totalorder %s69, %s70
    %p79 = scmp.eq.s32.totalorder %s17, 0
    %p80 = por %p78, %p79
    %p81 = scmp.ne.s32.totalorder %s69, %s70
    %p82 = scmp.eq.s32.totalorder %s18, 1
    %p83 = por %p81, %p82
    %p85 = scmp.ne.s32.totalorder %s70, %s84
    %p86 = scmp.eq.s32.totalorder %s18, 0
    %p87 = por %p85, %p86
    %s89 = sadd.s32 %s88, 1
    %p92 = scmp.eq.s32.totalorder %s12, 1
    %p93 = scmp.ne.s32.totalorder %s88, %s90
    %p94 = scmp.eq.s32.totalorder %s12, 0
    %p95 = por %p93, %p94
    %p96 = scmp.ne.s32.totalorder %s88, %s90
    %p97 = scmp.eq.s32.totalorder %s17, 1
    %p98 = por %p96, %p97
    %p99 = scmp.ne.s32.totalorder %s90, %s91
    %p100 = scmp.eq.s32.totalorder %s17, 0
    %p101 = por %p99, %p100
    %p102 = scmp.ne.s32.totalorder %s90, %s91
    %p103 = scmp.eq.s32.totalorder %s18, 1
    %p104 = por %p102, %p103
    %p106 = scmp.ne.s32.totalorder %s91, %s105
    %p107 = scmp.eq.s32.totalorder %s18, 0
    %p108 = por %p106, %p107
    %s110 = sadd.s32 %s109, 1
    %p113 = scmp.eq.s32.totalorder %s12, 1
    %p114 = scmp.ne.s32.totalorder %s109, %s111
    %p115 = scmp.eq.s32.totalorder %s12, 0
    %p116 = por %p114, %p115
    %p117 = scmp.ne.s32.totalorder %s109, %s111
    %p118 = scmp.eq.s32.totalorder %s17, 1
    %p119 = por %p117, %p118
    %p120 = scmp.ne.s32.totalorder %s111, %s112
    %p121 = scmp.eq.s32.totalorder %s17, 0
    %p122 = por %p120, %p121
    %p123 = scmp.ne.s32.totalorder %s111, %s112
    %p124 = scmp.eq.s32.totalorder %s18, 1
    %p125 = por %p123, %p124
    %p127 = scmp.ne.s32.totalorder %s112, %s126
    %p128 = scmp.eq.s32.totalorder %s18, 0
    %p129 = por %p127, %p128
    %s131 = sadd.s32 %s130, 1
    %p134 = scmp.eq.s32.totalorder %s12, 1
    %p135 = scmp.ne.s32.totalorder %s130, %s132
    %p136 = scmp.eq.s32.totalorder %s12, 0
    %p137 = por %p135, %p136
    %p138 = scmp.ne.s32.totalorder %s130, %s132
    %p139 = scmp.eq.s32.totalorder %s17, 1
    %p140 = por %p138, %p139
    %p141 = scmp.ne.s32.totalorder %s132, %s133
    %p142 = scmp.eq.s32.totalorder %s17, 0
    %p143 = por %p141, %p142
    %p144 = scmp.ne.s32.totalorder %s132, %s133
    %p145 = scmp.eq.s32.totalorder %s18, 1
    %p146 = por %p144, %p145
    %p148 = scmp.ne.s32.totalorder %s133, %s147
    %p149 = scmp.eq.s32.totalorder %s18, 0
    %p150 = por %p148, %p149
    %s151 = ssub.s32 %s12, %s19
    %p152 = scmp.eq.s32.totalorder %s151, 0
    %s154 = sadd.s32 %s153, 1
    %s155 = scalar_select %p152, %s153, %s154
    %p158 = pneg %p152
    %p159 = scmp.eq.s32.totalorder %s12, 1
    %p160 = por %p158, %p159
    %p161 = scmp.ne.s32.totalorder %s153, %s156
    %p162 = scmp.eq.s32.totalorder %s12, 0
    %p163 = por %p161, %p162
    %p164 = scmp.ne.s32.totalorder %s153, %s156
    %p165 = scmp.eq.s32.totalorder %s17, 1
    %p166 = por %p164, %p165
    %p167 = scmp.ne.s32.totalorder %s156, %s157
    %p168 = scmp.eq.s32.totalorder %s17, 0
    %p169 = por %p167, %p168
    %p170 = scmp.ne.s32.totalorder %s156, %s157
    %p171 = scmp.eq.s32.totalorder %s18, 1
    %p172 = por %p170, %p171
    %p174 = scmp.ne.s32.totalorder %s157, %s173
    %p175 = scmp.eq.s32.totalorder %s18, 0
    %p176 = por %p174, %p175
    %p177 = scmp.le.s32.totalorder 1, %s12
    %p178 = scmp.lt.s32.totalorder %s12, 3
    %p179 = pnand %p177, %p178
    %p180 = pneg %p179
    // Predicated region
    $region9: #{actor_forward.1} parent=5 // pred_check
      _
    $region10: #{actor_forward.1} parent=5 // pred_check_branch
      %182 = sbr.rel (%p179) target = $region12
    $region11: #{actor_forward.1} parent=5 // pred_region
      %s183 = ssub.s32 %s12, 1
      // Predicated region
      $region13: #{actor_forward.1} parent=11 // pred_check
        %p184 = pneg %p59
      $region14: #{actor_forward.1} parent=11 // pred_check_branch
        %186 = sbr.rel (%p184) target = $region16
      $region15: #{actor_forward.1} parent=11 // pred_region
        _
      $region16: #{actor_forward.1} parent=11 // pred_fallthru
        _
      // Predicated region
      $region17: #{actor_forward.1} parent=11 // pred_check
        %p187 = pneg %p80
      $region18: #{actor_forward.1} parent=11 // pred_check_branch
        %189 = sbr.rel (%p187) target = $region20
      $region19: #{actor_forward.1} parent=11 // pred_region
        _
      $region20: #{actor_forward.1} parent=11 // pred_fallthru
        _
      // Predicated region
      $region21: #{actor_forward.1} parent=11 // pred_check
        %p190 = pneg %p101
      $region22: #{actor_forward.1} parent=11 // pred_check_branch
        %192 = sbr.rel (%p190) target = $region24
      $region23: #{actor_forward.1} parent=11 // pred_region
        _
      $region24: #{actor_forward.1} parent=11 // pred_fallthru
        _
      // Predicated region
      $region25: #{actor_forward.1} parent=11 // pred_check
        %p193 = pneg %p122
      $region26: #{actor_forward.1} parent=11 // pred_check_branch
        %195 = sbr.rel (%p193) target = $region28
      $region27: #{actor_forward.1} parent=11 // pred_region
        _
      $region28: #{actor_forward.1} parent=11 // pred_fallthru
        _
      // Predicated region
      $region29: #{actor_forward.1} parent=11 // pred_check
        %p196 = pneg %p143
      $region30: #{actor_forward.1} parent=11 // pred_check_branch
        %198 = sbr.rel (%p196) target = $region32
      $region31: #{actor_forward.1} parent=11 // pred_region
        _
      $region32: #{actor_forward.1} parent=11 // pred_fallthru
        _
    $region12: #{actor_forward.1} parent=5 // pred_fallthru
      _
    %p199 = scmp.lt.s32.totalorder %s12, 2
    // Predicated region
    $region33: #{actor_forward.1} parent=5 // pred_check
      %p200 = pneg %p199
    $region34: #{actor_forward.1} parent=5 // pred_check_branch
      %202 = sbr.rel (%p200) target = $region36
    $region35: #{actor_forward.1} parent=5 // pred_region
      // Predicated region
      $region37: #{actor_forward.1} parent=35 // pred_check
        %p203 = pneg %p32
      $region38: #{actor_forward.1} parent=35 // pred_check_branch
        %205 = sbr.rel (%p203) target = $region40
      $region39: #{actor_forward.1} parent=35 // pred_region
        %p206 = scmp.lt.s32.totalorder %s12, 1
        %s207 = scalar_select %p206, %s12, 1
        %s208 = smul.addr %s207, 8
        %s209 = scalar_lea.vmem %s0, %s208
      $region40: #{actor_forward.1} parent=35 // pred_fallthru
        _
    $region36: #{actor_forward.1} parent=5 // pred_fallthru
      _
    %p210 = scmp.le.s32.totalorder 1, %s12
    %p211 = scmp.lt.s32.totalorder %s12, 3
    %p212 = pnand %p210, %p211
    %p213 = pneg %p212
    // Predicated region
    $region41: #{actor_forward.1} parent=5 // pred_check
      _
    $region42: #{actor_forward.1} parent=5 // pred_check_branch
      %215 = sbr.rel (%p212) target = $region44
    $region43: #{actor_forward.1} parent=5 // pred_region
      %s216 = ssub.s32 %s12, 1
      %p217 = scmp.lt.s32.totalorder %s17, 1
      %s218 = scalar_select %p217, %s17, 1
      %s219 = smul.addr %s218, 8
      %s220 = scalar_lea.vmem %s0, %s219
      %p221 = pneg %p38
      %p222 = pneg %p35
      %p223 = pneg %p59
      %p224 = pneg %p56
      %p225 = pneg %p80
      %p226 = pneg %p77
      %p227 = pneg %p101
      %p228 = pneg %p98
      %p229 = pneg %p122
      %p230 = pneg %p119
      %p231 = pneg %p143
      %p232 = pneg %p140
      %p233 = pneg %p169
      %p234 = pneg %p166
      %p235 = scmp.lt.s32.totalorder %s17, 1
      %s236 = scalar_select %p235, %s17, 1
      %s237 = smul.addr %s236, 8
      %s238 = scalar_lea.vmem %s6, %s237
      %p239 = scmp.lt.s32.totalorder %s17, 1
      %s240 = scalar_select %p239, %s17, 1
      %s241 = smul.addr %s240, 8
      %s242 = scalar_lea.vmem %s0, %s241
      %p243 = scmp.lt.s32.totalorder %s17, 1
      %s244 = scalar_select %p243, %s17, 1
      %s245 = smul.addr %s244, 8
      %s246 = scalar_lea.vmem %s6, %s245
      %v247 = vld [vmem:[%s242] sm:$0xff]
      %v248 = vld [vmem:[%s4] sm:$0xff]
      %v249 = vld [vmem:[%s1] sm:$0xff]
      %v250 = vld [vmem:[%s1 + $0x8] sm:$0xff]
      %v251 = vld [vmem:[%s1 + $0x10] sm:$0xff]
      %v252 = vld [vmem:[%s1 + $0x18] sm:$0xff]
      %v253 = vld [vmem:[%s1 + $0x20] sm:$0xff]
      %v254 = vld [vmem:[%s1 + $0x28] sm:$0xff]
      %v255 = vld [vmem:[%s1 + $0x30] sm:$0xff]
      %v256 = vld [vmem:[%s1 + $0x38] sm:$0xff]
      %v257 = vld [vmem:[%s1 + $0x40] sm:$0xff]
      %v258 = vld [vmem:[%s1 + $0x48] sm:$0xff]
      %v259 = vld [vmem:[%s1 + $0x50] sm:$0xff]
      %v260 = vld [vmem:[%s1 + $0x58] sm:$0xff]
      %v261 = vld [vmem:[%s1 + $0x60] sm:$0xff]
      %v262 = vld [vmem:[%s1 + $0x68] sm:$0xff]
      %v263 = vld [vmem:[%s1 + $0x70] sm:$0xff]
      %v264 = vld [vmem:[%s1 + $0x78] sm:$0xff]
      %v265 = vlaneseq
      %v266 = vshrl.u32 %v265, 7
      %v267 = vsub.s32 0, %v266
      %v268 = vrot.slane %v248, %v267
      %269 = vmatprep.subr.mxu0 0.0
      %270 = vmatpush1.msra.mxu0 %v264
      %271 = vmatprep.subr.mxu0 0.0
      %272 = vmatpush1.msra.mxu0 %v263
      %273 = vmatprep.subr.mxu0 0.0
      %274 = vmatpush1.msra.mxu0 %v262
      %275 = vmatprep.subr.mxu0 0.0
      %276 = vmatpush1.msra.mxu0 %v261
      %277 = vmatprep.subr.mxu0 0.0
      %278 = vmatpush1.msra.mxu0 %v260
      %279 = vmatprep.subr.mxu0 0.0
      %280 = vmatpush1.msra.mxu0 %v259
      %281 = vmatprep.subr.mxu0 0.0
      %282 = vmatpush1.msra.mxu0 %v258
      %283 = vmatprep.subr.mxu0 0.0
      %284 = vmatpush1.msra.mxu0 %v257
      %285 = vmatprep.subr.mxu0 0.0
      %286 = vmatpush1.msra.mxu0 %v256
      %287 = vmatprep.subr.mxu0 0.0
      %288 = vmatpush1.msra.mxu0 %v255
      %289 = vmatprep.subr.mxu0 0.0
      %290 = vmatpush1.msra.mxu0 %v254
      %291 = vmatprep.subr.mxu0 0.0
      %292 = vmatpush1.msra.mxu0 %v253
      %293 = vmatprep.subr.mxu0 0.0
      %294 = vmatpush1.msra.mxu0 %v252
      %295 = vmatprep.subr.mxu0 0.0
      %296 = vmatpush1.msra.mxu0 %v251
      %297 = vmatprep.subr.mxu0 0.0
      %298 = vmatpush1.msra.mxu0 %v250
      %299 = vmatprep.subr.mxu0 0.0
      %300 = vmatpush1.msra.mxu0 %v249
      %301 = vmatprep.subr.mxu0 0.0
      %302 = vmatpush2.msra.mxu0 0.0
      %303 = vmatprep.subr.mxu0 0.0
      %304 = vmatpush2.msra.mxu0 0.0
      %305 = vmatprep.subr.mxu0 0.0
      %306 = vmatpush2.msra.mxu0 0.0
      %307 = vmatprep.subr.mxu0 0.0
      %308 = vmatpush2.msra.mxu0 0.0
      %309 = vmatprep.subr.mxu0 0.0
      %310 = vmatpush2.msra.mxu0 0.0
      %311 = vmatprep.subr.mxu0 0.0
      %312 = vmatpush2.msra.mxu0 0.0
      %313 = vmatprep.subr.mxu0 0.0
      %314 = vmatpush2.msra.mxu0 0.0
      %315 = vmatprep.subr.mxu0 0.0
      %316 = vmatpush2.msra.mxu0 0.0
      %317 = vmatprep.subr.mxu0 0.0
      %318 = vmatpush2.msra.mxu0 0.0
      %319 = vmatprep.subr.mxu0 0.0
      %320 = vmatpush2.msra.mxu0 0.0
      %321 = vmatprep.subr.mxu0 0.0
      %322 = vmatpush2.msra.mxu0 0.0
      %323 = vmatprep.subr.mxu0 0.0
      %324 = vmatpush2.msra.mxu0 0.0
      %325 = vmatprep.subr.mxu0 0.0
      %326 = vmatpush2.msra.mxu0 0.0
      %327 = vmatprep.subr.mxu0 0.0
      %328 = vmatpush2.msra.mxu0 0.0
      %329 = vmatprep.subr.mxu0 0.0
      %330 = vmatpush2.msra.mxu0 0.0
      %331 = vmatprep.subr.mxu0 0.0
      %332 = vmatpush2.msra.mxu0 0.0
      %333 = vmatprep.mubr.f32.mxu0 0.0
      %334 = vmatmul.mubr.f32.gmra.mxu0 %v247
      %v335 = vpop.f32.mrf.mxu0
      %v336 = vadd.f32 %v268, %v335
      %v337 = vpop.f32.mrf.mxu0
      %338 = vdwg.mxu0
      %339 = vadd.xlane.f32.xlu0 %v336
      %v340 = vpop.xlane.xlu0 %339
      %v341 = vmul.f32 %v340, 0.03125
      %v342 = vlaneseq
      %v343 = vand.u32 %v342, 127
      %vm344 = vcmp.lt.s32.totalorder %v343, 32
      %v345 = vsub.f32 %v336, %v341
      %v346 = vsel %vm344, 1, 0
      %vm347 = vcmp.eq.s32.totalorder %v346, 1
      %v348 = vsel %vm347, %v345, 0.0
      %v349 = vmul.f32 %v348, %v348
      %350 = vadd.xlane.f32.xlu0 %v349
      %v351 = vpop.xlane.xlu0 %350
      %v352 = vmul.f32 %v351, 0.03125
      %v353 = vadd.f32 %v352, 1e-05
      %v354 = vrsqrt.pop %v353
      %v355 = vmul.f32 %v348, %v354
      %v356 = vlaneseq
      %v357 = vshrl.u32 %v356, 7
      %v358 = vsub.s32 1, %v357
      %v359 = vrot.slane %v248, %v358
      %v360 = vmul.f32 %v355, %v359
      %v361 = vlaneseq
      %v362 = vshrl.u32 %v361, 7
      %v363 = vsub.s32 2, %v362
      %v364 = vrot.slane %v248, %v363
      %v365 = vadd.f32 %v360, %v364
      %v366 = vmax.f32 %v365, 0.0
      %v367 = vld [vmem:[%s2] sm:$0xff]
      %v368 = vld [vmem:[%s2 + $0x8] sm:$0xff]
      %v369 = vld [vmem:[%s2 + $0x10] sm:$0xff]
      %v370 = vld [vmem:[%s2 + $0x18] sm:$0xff]
      %v371 = vld [vmem:[%s2 + $0x20] sm:$0xff]
      %v372 = vld [vmem:[%s2 + $0x28] sm:$0xff]
      %v373 = vld [vmem:[%s2 + $0x30] sm:$0xff]
      %v374 = vld [vmem:[%s2 + $0x38] sm:$0xff]
      %v375 = vld [vmem:[%s2 + $0x40] sm:$0xff]
      %v376 = vld [vmem:[%s2 + $0x48] sm:$0xff]
      %v377 = vld [vmem:[%s2 + $0x50] sm:$0xff]
      %v378 = vld [vmem:[%s2 + $0x58] sm:$0xff]
      %v379 = vld [vmem:[%s2 + $0x60] sm:$0xff]
      %v380 = vld [vmem:[%s2 + $0x68] sm:$0xff]
      %v381 = vld [vmem:[%s2 + $0x70] sm:$0xff]
      %v382 = vld [vmem:[%s2 + $0x78] sm:$0xff]
      %v383 = vlaneseq
      %v384 = vshrl.u32 %v383, 7
      %v385 = vsub.s32 3, %v384
      %v386 = vrot.slane %v248, %v385
      %387 = vmatprep.subr.mxu0 0.0
      %388 = vmatpush1.msra.mxu0 %v382
      %389 = vmatprep.subr.mxu0 0.0
      %390 = vmatpush1.msra.mxu0 %v381
      %391 = vmatprep.subr.mxu0 0.0
      %392 = vmatpush1.msra.mxu0 %v380
      %393 = vmatprep.subr.mxu0 0.0
      %394 = vmatpush1.msra.mxu0 %v379
      %395 = vmatprep.subr.mxu0 0.0
      %396 = vmatpush1.msra.mxu0 %v378
      %397 = vmatprep.subr.mxu0 0.0
      %398 = vmatpush1.msra.mxu0 %v377
      %399 = vmatprep.subr.mxu0 0.0
      %400 = vmatpush1.msra.mxu0 %v376
      %401 = vmatprep.subr.mxu0 0.0
      %402 = vmatpush1.msra.mxu0 %v375
      %403 = vmatprep.subr.mxu0 0.0
      %404 = vmatpush1.msra.mxu0 %v374
      %405 = vmatprep.subr.mxu0 0.0
      %406 = vmatpush1.msra.mxu0 %v373
      %407 = vmatprep.subr.mxu0 0.0
      %408 = vmatpush1.msra.mxu0 %v372
      %409 = vmatprep.subr.mxu0 0.0
      %410 = vmatpush1.msra.mxu0 %v371
      %411 = vmatprep.subr.mxu0 0.0
      %412 = vmatpush1.msra.mxu0 %v370
      %413 = vmatprep.subr.mxu0 0.0
      %414 = vmatpush1.msra.mxu0 %v369
      %415 = vmatprep.subr.mxu0 0.0
      %416 = vmatpush1.msra.mxu0 %v368
      %417 = vmatprep.subr.mxu0 0.0
      %418 = vmatpush1.msra.mxu0 %v367
      %419 = vmatprep.subr.mxu0 0.0
      %420 = vmatpush2.msra.mxu0 0.0
      %421 = vmatprep.subr.mxu0 0.0
      %422 = vmatpush2.msra.mxu0 0.0
      %423 = vmatprep.subr.mxu0 0.0
      %424 = vmatpush2.msra.mxu0 0.0
      %425 = vmatprep.subr.mxu0 0.0
      %426 = vmatpush2.msra.mxu0 0.0
      %427 = vmatprep.subr.mxu0 0.0
      %428 = vmatpush2.msra.mxu0 0.0
      %429 = vmatprep.subr.mxu0 0.0
      %430 = vmatpush2.msra.mxu0 0.0
      %431 = vmatprep.subr.mxu0 0.0
      %432 = vmatpush2.msra.mxu0 0.0
      %433 = vmatprep.subr.mxu0 0.0
      %434 = vmatpush2.msra.mxu0 0.0
      %435 = vmatprep.subr.mxu0 0.0
      %436 = vmatpush2.msra.mxu0 0.0
      %437 = vmatprep.subr.mxu0 0.0
      %438 = vmatpush2.msra.mxu0 0.0
      %439 = vmatprep.subr.mxu0 0.0
      %440 = vmatpush2.msra.mxu0 0.0
      %441 = vmatprep.subr.mxu0 0.0
      %442 = vmatpush2.msra.mxu0 0.0
      %443 = vmatprep.subr.mxu0 0.0
      %444 = vmatpush2.msra.mxu0 0.0
      %445 = vmatprep.subr.mxu0 0.0
      %446 = vmatpush2.msra.mxu0 0.0
      %447 = vmatprep.subr.mxu0 0.0
      %448 = vmatpush2.msra.mxu0 0.0
      %449 = vmatprep.subr.mxu0 0.0
      %450 = vmatpush2.msra.mxu0 0.0
      %451 = vmatprep.mubr.f32.mxu0 0.0
      %452 = vmatmul.mubr.f32.gmra.mxu0 %v366
      %v453 = vpop.f32.mrf.mxu0
      %v454 = vadd.f32 %v386, %v453
      %v455 = vpop.f32.mrf.mxu0
      %456 = vdwg.mxu0
      %457 = vadd.xlane.f32.xlu0 %v454
      %v458 = vpop.xlane.xlu0 %457
      %v459 = vmul.f32 %v458, 0.03125
      %v460 = vsub.f32 %v454, %v459
      %v461 = vsel %vm347, %v460, 0.0
      %v462 = vmul.f32 %v461, %v461
      %463 = vadd.xlane.f32.xlu0 %v462
      %v464 = vpop.xlane.xlu0 %463
      %v465 = vmul.f32 %v464, 0.03125
      %v466 = vadd.f32 %v465, 1e-05
      %v467 = vrsqrt.pop %v466
      %v468 = vmul.f32 %v461, %v467
      %v469 = vlaneseq
      %v470 = vshrl.u32 %v469, 7
      %v471 = vsub.s32 4, %v470
      %v472 = vrot.slane %v248, %v471
      %v473 = vmul.f32 %v468, %v472
      %v474 = vlaneseq
      %v475 = vshrl.u32 %v474, 7
      %v476 = vsub.s32 5, %v475
      %v477 = vrot.slane %v248, %v476
      %v478 = vadd.f32 %v473, %v477
      %v479 = vmax.f32 %v478, 0.0
      %v480 = vld [vmem:[%s3] sm:$0xff]
      %v481 = vld [vmem:[%s3 + $0x8] sm:$0xff]
      %v482 = vld [vmem:[%s3 + $0x10] sm:$0xff]
      %v483 = vld [vmem:[%s3 + $0x18] sm:$0xff]
      %v484 = vld [vmem:[%s3 + $0x20] sm:$0xff]
      %v485 = vld [vmem:[%s3 + $0x28] sm:$0xff]
      %v486 = vld [vmem:[%s3 + $0x30] sm:$0xff]
      %v487 = vld [vmem:[%s3 + $0x38] sm:$0xff]
      %v488 = vld [vmem:[%s3 + $0x40] sm:$0xff]
      %v489 = vld [vmem:[%s3 + $0x48] sm:$0xff]
      %v490 = vld [vmem:[%s3 + $0x50] sm:$0xff]
      %v491 = vld [vmem:[%s3 + $0x58] sm:$0xff]
      %v492 = vld [vmem:[%s3 + $0x60] sm:$0xff]
      %v493 = vld [vmem:[%s3 + $0x68] sm:$0xff]
      %v494 = vld [vmem:[%s3 + $0x70] sm:$0xff]
      %v495 = vld [vmem:[%s3 + $0x78] sm:$0xff]
      %v496 = vld [vmem:[%s5] sm:$0x1]
      %v498 = vlaneseq
      %v499 = vshrl.u32 %v498, 7
      %v500 = vsub.s32 0, %v499
      %v501 = vrot.slane %v496, %v500
      %503 = vmatprep.subr.mxu0 0.0
      %504 = vmatpush1.msra.mxu0 %v495
      %505 = vmatprep.subr.mxu0 0.0
      %506 = vmatpush1.msra.mxu0 %v494
      %507 = vmatprep.subr.mxu0 0.0
      %508 = vmatpush1.msra.mxu0 %v493
      %509 = vmatprep.subr.mxu0 0.0
      %510 = vmatpush1.msra.mxu0 %v492
      %511 = vmatprep.subr.mxu0 0.0
      %512 = vmatpush1.msra.mxu0 %v491
      %513 = vmatprep.subr.mxu0 0.0
      %514 = vmatpush1.msra.mxu0 %v490
      %515 = vmatprep.subr.mxu0 0.0
      %516 = vmatpush1.msra.mxu0 %v489
      %517 = vmatprep.subr.mxu0 0.0
      %518 = vmatpush1.msra.mxu0 %v488
      %519 = vmatprep.subr.mxu0 0.0
      %520 = vmatpush1.msra.mxu0 %v487
      %521 = vmatprep.subr.mxu0 0.0
      %522 = vmatpush1.msra.mxu0 %v486
      %523 = vmatprep.subr.mxu0 0.0
      %524 = vmatpush1.msra.mxu0 %v485
      %525 = vmatprep.subr.mxu0 0.0
      %526 = vmatpush1.msra.mxu0 %v484
      %527 = vmatprep.subr.mxu0 0.0
      %528 = vmatpush1.msra.mxu0 %v483
      %529 = vmatprep.subr.mxu0 0.0
      %530 = vmatpush1.msra.mxu0 %v482
      %531 = vmatprep.subr.mxu0 0.0
      %532 = vmatpush1.msra.mxu0 %v481
      %533 = vmatprep.subr.mxu0 0.0
      %534 = vmatpush1.msra.mxu0 %v480
      %535 = vmatprep.subr.mxu0 0.0
      %536 = vmatpush2.msra.mxu0 0.0
      %537 = vmatprep.subr.mxu0 0.0
      %538 = vmatpush2.msra.mxu0 0.0
      %539 = vmatprep.subr.mxu0 0.0
      %540 = vmatpush2.msra.mxu0 0.0
      %541 = vmatprep.subr.mxu0 0.0
      %542 = vmatpush2.msra.mxu0 0.0
      %543 = vmatprep.subr.mxu0 0.0
      %544 = vmatpush2.msra.mxu0 0.0
      %545 = vmatprep.subr.mxu0 0.0
      %546 = vmatpush2.msra.mxu0 0.0
      %547 = vmatprep.subr.mxu0 0.0
      %548 = vmatpush2.msra.mxu0 0.0
      %549 = vmatprep.subr.mxu0 0.0
      %550 = vmatpush2.msra.mxu0 0.0
      %551 = vmatprep.subr.mxu0 0.0
      %552 = vmatpush2.msra.mxu0 0.0
      %553 = vmatprep.subr.mxu0 0.0
      %554 = vmatpush2.msra.mxu0 0.0
      %555 = vmatprep.subr.mxu0 0.0
      %556 = vmatpush2.msra.mxu0 0.0
      %557 = vmatprep.subr.mxu0 0.0
      %558 = vmatpush2.msra.mxu0 0.0
      %559 = vmatprep.subr.mxu0 0.0
      %560 = vmatpush2.msra.mxu0 0.0
      %561 = vmatprep.subr.mxu0 0.0
      %562 = vmatpush2.msra.mxu0 0.0
      %563 = vmatprep.subr.mxu0 0.0
      %564 = vmatpush2.msra.mxu0 0.0
      %565 = vmatprep.subr.mxu0 0.0
      %566 = vmatpush2.msra.mxu0 0.0
      %567 = vmatprep.mubr.f32.mxu0 0.0
      %568 = vmatmul.mubr.f32.gmra.mxu0 %v479
      %v569 = vpop.f32.mrf.mxu0
      %v570 = vadd.f32 %v501, %v569
      %v571 = vpop.f32.mrf.mxu0
      %572 = vdwg.mxu0
      %v573 = vtanh.pop %v570
      %574 = vst [vmem:[%s246] sm:$0xff] %v573
      %p575 = scmp.lt.s32.totalorder %s17, 1
      %s576 = scalar_select %p575, %s17, 1
      %s577 = smul.addr %s576, 8
      %s578 = scalar_lea.vmem %s6, %s577
      // Predicated region
      $region45: #{actor_forward.1} parent=43 // pred_check
        %p579 = pneg %p166
      $region46: #{actor_forward.1} parent=43 // pred_check_branch
        %581 = sbr.rel (%p579) target = $region48
      $region47: #{actor_forward.1} parent=43 // pred_region
        _
      $region48: #{actor_forward.1} parent=43 // pred_fallthru
        _
    $region44: #{actor_forward.1} parent=5 // pred_fallthru
      _
    %p582 = scmp.le.s32.totalorder 2, %s12
    // Predicated region
    $region49: #{actor_forward.1} parent=5 // pred_check
      %p583 = pneg %p582
    $region50: #{actor_forward.1} parent=5 // pred_check_branch
      %585 = sbr.rel (%p583) target = $region52
    $region51: #{actor_forward.1} parent=5 // pred_region
      %s586 = ssub.s32 %s12, 2
      // Predicated region
      $region53: #{actor_forward.1} parent=51 // pred_check
        %p587 = pneg %p172
      $region54: #{actor_forward.1} parent=51 // pred_check_branch
        %589 = sbr.rel (%p587) target = $region56
      $region55: #{actor_forward.1} parent=51 // pred_region
        %p590 = scmp.lt.s32.totalorder %s18, 1
        %s591 = scalar_select %p590, %s18, 1
        %s592 = smul.addr %s591, 8
        %s593 = scalar_lea.vmem %s6, %s592
      $region56: #{actor_forward.1} parent=51 // pred_fallthru
        _
    $region52: #{actor_forward.1} parent=5 // pred_fallthru
      _
  $region6: #{actor_forward.1} parent=0 // loop_footer
    %s16 = sadd.s32 1, %s12
  $region7: #{actor_forward.1} parent=0 // loop_footer_branch
    %11 = sbr.rel target = $region3
  $region8: #{actor_forward.1} parent=0 // loop_exit
    _

</llo_original>
